<compile_context>
chip_gen: v5e
topology: v5e:2x2
jax: 0.10.0
libtpu: 0.0.40
codegen_flags: <defaults>
</compile_context>

<pallas_src>
import functools

import jax
import jax.numpy as jnp
from jax.experimental import pallas as pl
from jax.experimental.pallas import tpu as pltpu


_EPS = 1e-5
_BLOCK_BYTE_BUDGET = 2 * 1024 * 1024     # ~2 MiB per block: >=85% HBM roofline, VMEM-safe
_VMEM_LIMIT_BYTES = 32 * 1024 * 1024     # explicit scoped-VMEM limit (safe on v5e/v6e/v7x)


def _round_up(v, m):
    return -(-v // m) * m


def _pick_row_tile(rows, lanes, itemsize):
    """Largest multiple-of-8 row tile whose (tr, lanes) block fits the byte budget."""
    tr = (_BLOCK_BYTE_BUDGET // max(1, lanes * itemsize)) // 8 * 8
    tr = max(tr, 8)
    # TODO(synk): if `lanes` is so large that even 8 rows exceed the budget, a
    #             lane-split with online mean/var would be needed for 'in'.
    if tr >= rows:
        # Whole array fits in one budget-sized block.  Still split in two when
        # possible so the single "parallel" grid axis can feed both v7x cores.
        if rows >= 16:
            tr = _round_up((rows + 1) // 2, 8)
        else:
            tr = rows
    return tr


def _apply_act(x, act):
    if act == "relu":
        return jnp.maximum(x, 0.0)
    if act == "softplus":
        # nn.Softplus(beta=1, threshold=20)
        return jnp.where(x > 20.0, x, jnp.log1p(jnp.exp(jnp.minimum(x, 20.0))))
    if act == "exp":
        return jnp.exp(x)
    if act == "sigmoid":
        return jax.nn.sigmoid(x)
    if act == "tanh":
        return jnp.tanh(x)
    if act == "none":
        return x
    raise ValueError(f"unknown activation {act!r}")


def _act_kernel(x_ref, o_ref, *, instance_norm, act):
    """Norm in {'in', 'none'}: optional per-row instance norm + activation."""
    x = x_ref[...].astype(jnp.float32)
    if instance_norm:
        mean = jnp.mean(x, axis=-1, keepdims=True)
        d = x - mean
        var = jnp.mean(d * d, axis=-1, keepdims=True)   # biased, two-pass
        x = d * jax.lax.rsqrt(var + _EPS)
    o_ref[...] = _apply_act(x, act).astype(o_ref.dtype)


def _act_affine_kernel(x_ref, scale_ref, shift_ref, o_ref, *, act, tr):
    """Eval-mode BN folded into per-row scale/shift (resident in VMEM) + activation."""
    if scale_ref.shape[0] == tr:
        # Single grid step: the resident array is exactly this tile's rows.
        scale = scale_ref[...]
        shift = shift_ref[...]
    else:
        # Whole-array resident (rows_pad, 1): slice this tile's rows (no per-step DMA).
        r0 = pl.multiple_of(pl.program_id(0) * tr, tr)
        scale = scale_ref[pl.ds(r0, tr), :]
        shift = shift_ref[pl.ds(r0, tr), :]
    x = x_ref[...].astype(jnp.float32) * scale + shift
    o_ref[...] = _apply_act(x, act).astype(o_ref.dtype)


def _run(kernel, x2, extra_inputs, extra_specs, tr):
    rows, lanes = x2.shape
    grid = (pl.cdiv(rows, tr),)
    return pl.pallas_call(
        kernel,
        out_shape=jax.ShapeDtypeStruct((rows, lanes), x2.dtype),
        grid_spec=pltpu.PrefetchScalarGridSpec(
            num_scalar_prefetch=0,
            grid=grid,
            in_specs=[pl.BlockSpec((tr, lanes), lambda i: (i, 0))] + list(extra_specs),
            out_specs=pl.BlockSpec((tr, lanes), lambda i: (i, 0)),
        ),
        compiler_params=pltpu.CompilerParams(
            dimension_semantics=("parallel",),
            vmem_limit_bytes=_VMEM_LIMIT_BYTES,
        ),
    )(x2, *extra_inputs)


def make_activation_params(kind: str, channel=None):
    """Deterministic parameter init mirroring Activation.__init__."""
    norm_str = kind.split("+")[0] if "+" in kind else "none"
    params = {}
    if norm_str in ("bn", "bn_noaffine"):
        assert channel is not None
        params["running_mean"] = jnp.zeros((channel,), jnp.float32)
        params["running_var"] = jnp.ones((channel,), jnp.float32)
        if norm_str == "bn":  # affine=True
            params["weight"] = jnp.ones((channel,), jnp.float32)
            params["bias"] = jnp.zeros((channel,), jnp.float32)
    return params


def activation_forward(x, kind: str, channel=None, params=None):
    """Pallas forward pass of the Activation module.  x: (N, C, H, W)."""
    if "+" in kind:
        norm_str, act_str = kind.split("+")
    else:
        norm_str, act_str = "none", kind
    params = params or {}

    N, C, H, W = x.shape
    itemsize = jnp.dtype(x.dtype).itemsize

    if norm_str in ("bn", "bn_noaffine"):
        # Eval-mode BN folded into a per-row scale/shift applied in-kernel.
        rows, lanes = N * C, H * W
        x2 = x.reshape(rows, lanes)
        rm = params["running_mean"].astype(jnp.float32)
        rv = params["running_var"].astype(jnp.float32)
        gamma = params.get("weight", jnp.ones((C,), jnp.float32))
        beta = params.get("bias", jnp.zeros((C,), jnp.float32))
        ch_scale = gamma * jax.lax.rsqrt(rv + _EPS)
        ch_shift = beta - rm * ch_scale

        tr = _pick_row_tile(rows, lanes, itemsize)
        rows_pad = pl.cdiv(rows, tr) * tr
        scale = jnp.tile(ch_scale, N).reshape(rows, 1)
        shift = jnp.tile(ch_shift, N).reshape(rows, 1)
        if rows_pad != rows:
            pad = ((0, rows_pad - rows), (0, 0))
            scale = jnp.pad(scale, pad)
            shift = jnp.pad(shift, pad)

        kernel = functools.partial(_act_affine_kernel, act=act_str, tr=tr)
        resident = pl.BlockSpec((rows_pad, 1), lambda i: (0, 0))  # whole-array resident
        out2 = _run(kernel, x2, [scale, shift], [resident, resident], tr)
        return out2.reshape(N, C, H, W)

    if norm_str == "in":
        rows, lanes = N * C, H * W
        x2 = x.reshape(rows, lanes)
        tr = _pick_row_tile(rows, lanes, itemsize)
        kernel = functools.partial(_act_kernel, instance_norm=True, act=act_str)
        out2 = _run(kernel, x2, [], [], tr)
        return out2.reshape(N, C, H, W)

    if norm_str != "none":
        raise ValueError(f"unknown norm {norm_str!r}")

    # Pure elementwise: reshape to a lane-dense slab independent of H*W.
    total = N * C * H * W
    lanes = None
    for cand in (1024, 512, 256, 128):
        if total % cand == 0:
            lanes = cand
            break
    if lanes is None:
        rows, lanes = N * C, H * W   # fallback: original layout (may be lane-masked)
    else:
        rows = total // lanes
    x2 = x.reshape(rows, lanes)
    tr = _pick_row_tile(rows, lanes, itemsize)
    kernel = functools.partial(_act_kernel, instance_norm=False, act=act_str)
    out2 = _run(kernel, x2, [], [], tr)
    return out2.reshape(N, C, H, W)


def _reference_forward(x, kind, params):
    """Pure-JAX reference for a tolerance check."""
    if "+" in kind:
        norm_str, act_str = kind.split("+")
    else:
        norm_str, act_str = "none", kind
    if norm_str == "in":
        mean = jnp.mean(x, axis=(2, 3), keepdims=True)
        var = jnp.var(x, axis=(2, 3), keepdims=True)
        x = (x - mean) * jax.lax.rsqrt(var + _EPS)
    elif norm_str in ("bn", "bn_noaffine"):
        rm = params["running_mean"].reshape(1, -1, 1, 1)
        rv = params["running_var"].reshape(1, -1, 1, 1)
        x = (x - rm) * jax.lax.rsqrt(rv + _EPS)
        if "weight" in params:
            x = x * params["weight"].reshape(1, -1, 1, 1) + params["bias"].reshape(1, -1, 1, 1)
    acts = {
        "relu": lambda v: jnp.maximum(v, 0.0),
        "softplus": lambda v: jnp.where(v > 20.0, v, jnp.log1p(jnp.exp(jnp.minimum(v, 20.0)))),
        "exp": jnp.exp,
        "sigmoid": jax.nn.sigmoid,
        "tanh": jnp.tanh,
        "none": lambda v: v,
    }
    return acts[act_str](x)


if __name__ == "__main__":
    ok = True

    # Small canonical shape (N, C, H, W) = (2, 4, 16, 16), float32.
    x_small = jax.random.normal(jax.random.PRNGKey(0), (2, 4, 16, 16), dtype=jnp.float32)
    for kind in ("in+relu", "relu", "bn+sigmoid", "bn_noaffine+tanh",
                 "softplus", "exp", "in+none", "none"):
        p = make_activation_params(kind, 4)
        out = jax.block_until_ready(activation_forward(x_small, kind, 4, p))
        ref = _reference_forward(x_small, kind, p)
        if not jnp.allclose(out, ref, atol=1e-5, rtol=1e-5):
            ok = False
            print(f"MISMATCH for kind={kind} (small)")

    # Larger shape: multi-block grid + ragged last row-block + resident BN scale/shift slice.
    x_big = jax.random.normal(jax.random.PRNGKey(1), (3, 40, 32, 32), dtype=jnp.float32) * 2.0 + 3.0
    for kind in ("in+relu", "bn+sigmoid", "tanh"):
        p = make_activation_params(kind, 40)
        out = jax.block_until_ready(activation_forward(x_big, kind, 40, p))
        ref = _reference_forward(x_big, kind, p)
        if not jnp.allclose(out, ref, atol=1e-4, rtol=1e-4):
            ok = False
            print(f"MISMATCH for kind={kind} (big)")

    # bf16 I/O (compute upcast to f32 inside the kernel).
    x_bf16 = x_small.astype(jnp.bfloat16)
    p = make_activation_params("in+relu", 4)
    out = jax.block_until_ready(activation_forward(x_bf16, "in+relu", 4, p))
    ref = _reference_forward(x_bf16.astype(jnp.float32), "in+relu", p).astype(jnp.bfloat16)
    if not jnp.allclose(out.astype(jnp.float32), ref.astype(jnp.float32), atol=2e-2, rtol=2e-2):
        ok = False
        print("MISMATCH for kind=in+relu (bf16)")

    if ok:
        print("KERNEL_OK")
</pallas_src>

<mosaic_0001>
module attributes {stable_mosaic.version = 11 : i64} {
  func.func @_act_kernel(%arg0: i32, %arg1: memref<8x256xf32, #tpu.memory_space<vmem>>, %arg2: memref<8x256xf32, #tpu.memory_space<vmem>>) attributes {dimension_semantics = [#tpu.dimension_semantics<parallel>], iteration_bounds = array<i64: 1>, scalar_prefetch = 0 : i64, scratch_operands = 0 : i64, tpu.core_type = #tpu.core_type<tc>, window_params = [{transform_indices = @transform_0, window_bounds = array<i64: 8, 256>}, {transform_indices = @transform_1, window_bounds = array<i64: 8, 256>}]} {
    %c0 = arith.constant 0 : index
    %c0_0 = arith.constant 0 : index
    %0 = vector.load %arg1[%c0, %c0_0] : memref<8x256xf32, #tpu.memory_space<vmem>>, vector<8x256xf32>
    %cst = arith.constant dense<0.000000e+00> : vector<8xf32>
    %1 = vector.multi_reduction <add>, %0, %cst [1] : vector<8x256xf32> to vector<8xf32>
    %2 = vector.shape_cast %1 : vector<8xf32> to vector<8x1xf32>
    %cst_1 = arith.constant 2.560000e+02 : f32
    %3 = vector.broadcast %cst_1 : f32 to vector<8x1xf32>
    %4 = arith.divf %2, %3 : vector<8x1xf32>
    %5 = vector.broadcast %4 : vector<8x1xf32> to vector<8x256xf32>
    %6 = arith.subf %0, %5 : vector<8x256xf32>
    %7 = arith.mulf %6, %6 : vector<8x256xf32>
    %cst_2 = arith.constant dense<0.000000e+00> : vector<8xf32>
    %8 = vector.multi_reduction <add>, %7, %cst_2 [1] : vector<8x256xf32> to vector<8xf32>
    %9 = vector.shape_cast %8 : vector<8xf32> to vector<8x1xf32>
    %cst_3 = arith.constant 2.560000e+02 : f32
    %10 = vector.broadcast %cst_3 : f32 to vector<8x1xf32>
    %11 = arith.divf %9, %10 : vector<8x1xf32>
    %cst_4 = arith.constant 9.99999974E-6 : f32
    %12 = vector.broadcast %cst_4 : f32 to vector<8x1xf32>
    %13 = arith.addf %11, %12 : vector<8x1xf32>
    %14 = math.rsqrt %13 : vector<8x1xf32>
    %15 = vector.broadcast %14 : vector<8x1xf32> to vector<8x256xf32>
    %16 = arith.mulf %6, %15 : vector<8x256xf32>
    %cst_5 = arith.constant 0.000000e+00 : f32
    %17 = vector.broadcast %cst_5 : f32 to vector<8x256xf32>
    %18 = arith.maximumf %16, %17 : vector<8x256xf32>
    %c0_6 = arith.constant 0 : index
    %c0_7 = arith.constant 0 : index
    %19 = vector.load %arg2[%c0_6, %c0_7] : memref<8x256xf32, #tpu.memory_space<vmem>>, vector<8x256xf32>
    tpu.vector_store %arg2[%c0_6, %c0_7], %18 {strides = array<i32>} : memref<8x256xf32, #tpu.memory_space<vmem>>, vector<8x256xf32>,
    return
  }
  func.func @transform_0(%arg0: i32) -> (i32, i32) {
    %c0_i32 = arith.constant 0 : i32
    %c0_i32_0 = arith.constant 0 : i32
    return %arg0, %c0_i32 : i32, i32
  }
  func.func @transform_1(%arg0: i32) -> (i32, i32) {
    %c0_i32 = arith.constant 0 : i32
    %c0_i32_0 = arith.constant 0 : i32
    return %arg0, %c0_i32 : i32, i32
  }
}

</mosaic_0001>

<llo_original>
// kernel: tpu_custom_call.1
$region0: #{tpu_custom_call.1}
  #allocation0 [shape = 'u32[]', space=smem, size = 0x4, offset = 0x4, fixed_abs, tag = 'smem constant byte address 0x4 - core index']
  #allocation1 [shape = 'u32[72,128]{1,0:T(1,128)}', space=vmem, size = 0x9000, scoped, tag = 'internal scratch']
  %s0 = inlined_call_operand.hbm [shape: f32[8,256], index: 0, kind: input, shape index: {}]
  %s1 = inlined_call_operand.hbm [shape: f32[8,256], index: 1, kind: output, shape index: {}]
  %s2 = sld [smem:[#allocation0]]
  $region18: #{tpu_custom_call.1} parent=0
    _
  %s4 = ssub.s32 1, %s2
  %s5 = scalar_select 0, %s4, %s2
  $region1: #{tpu_custom_call.1} parent=0
    #allocation2 [shape = 'u8[8192]{0}', space=vmem, size = 0x2000, scoped, tag = 'input window, operand 0, single buffered']
    #allocation3 [shape = 's32[1]{0}', space=sflag, size = 0x4, scoped, tag = 'scoped memory for tpu_custom_call.1']
    #allocation4 [shape = 's32[1]{0}', space=sflag, size = 0x4, scoped, tag = 'scoped memory for tpu_custom_call.1']
    #allocation5 [shape = 'u8[8192]{0}', space=vmem, size = 0x2000, scoped, tag = 'output window, operand 0, single buffered']
    %6 = vsyncpa [#allocation3], 0
    %7 = vsyncpa [#allocation4], 0
    // Predicated region
    $region2: #{tpu_custom_call.1} parent=1 // pred_check
      _
    $region3: #{tpu_custom_call.1} parent=1 // pred_check_branch
      %9 = sbr.rel (0) target = $region5
    $region4: #{tpu_custom_call.1} parent=1 // pred_region
      %11 = vsyncadd [#allocation3], 0
      %s13 = sshll.u32 %s0, 4
      %s14 = int_to_ptr.hbm [resolvable:$true] %s13
      %s15 = sshll.u32 [#allocation2], 4
      %s16 = int_to_ptr.vmem [resolvable:$true] %s15
      %18 = dma.hbm_to_vmem [thread:$0]  %s14, 256, %s16, [#allocation3]
    $region5: #{tpu_custom_call.1} parent=1 // pred_fallthru
      _
    // Predicated region
    $region6: #{tpu_custom_call.1} parent=1 // pred_check
      _
    $region7: #{tpu_custom_call.1} parent=1 // pred_check_branch
      %20 = sbr.rel (0) target = $region9
    $region8: #{tpu_custom_call.1} parent=1 // pred_region
      %22 = dma.done [#allocation3], 256
    $region9: #{tpu_custom_call.1} parent=1 // pred_fallthru
      _
    %v23 = vld [vmem:[#allocation2] sm:$0xff]
    %v24 = vld [vmem:[#allocation2 + $0x8] sm:$0xff]
    %v25 = vadd.f32 %v23, %v24
    %26 = vadd.xlane.f32.xlu0 %v25
    %v27 = vpop.xlane.xlu0 %26
    %v28 = vrcp.pop 256.0
    %v29 = vmul.f32 256.0, %v28
    %v30 = vsub.f32 1.0, %v29
    %v31 = vmul.f32 %v28, %v30
    %v32 = vadd.f32 %v28, %v31
    %vm33 = vweird.f32 %v28
    %v34 = vsel %vm33, %v28, %v32
    %v35 = vmul.f32 %v27, %v34
    %v36 = vsub.f32 %v23, %v35
    %v37 = vsub.f32 %v24, %v35
    %v38 = vmul.f32 %v36, %v36
    %v39 = vmul.f32 %v37, %v37
    %v40 = vadd.f32 %v38, %v39
    %41 = vadd.xlane.f32.xlu0 %v40
    %v42 = vpop.xlane.xlu0 %41
    %v43 = vmul.f32 %v42, %v34
    %v44 = vadd.f32 %v43, 1e-05
    %v45 = vrsqrt.pop %v44
    %v46 = vmul.f32 %v45, %v44
    %v47 = vmul.f32 %v46, %v45
    %v48 = vmul.f32 0.5, %v47
    %v49 = vsub.f32 1.5, %v48
    %v50 = vmul.f32 %v45, %v49
    %vm51 = vweird.f32 %v44
    %vm52 = vweird.f32 %v45
    %vm53 = vmor %vm51, %vm52
    %v54 = vsel %vm53, %v45, %v50
    %v55 = vmul.f32 %v36, %v54
    %v56 = vmul.f32 %v37, %v54
    %v57 = vmax.f32 %v55, 0.0
    %v58 = vmax.f32 %v56, 0.0
    %59 = vst [vmem:[#allocation5] sm:$0xff] %v57
    %60 = vst [vmem:[#allocation5 + $0x8] sm:$0xff] %v58
    // Predicated region
    $region10: #{tpu_custom_call.1} parent=1 // pred_check
      _
    $region11: #{tpu_custom_call.1} parent=1 // pred_check_branch
      %62 = sbr.rel (0) target = $region13
    $region12: #{tpu_custom_call.1} parent=1 // pred_region
      %64 = vsyncadd [#allocation4], 0
      %s66 = sshll.u32 [#allocation5], 4
      %s67 = int_to_ptr.vmem [resolvable:$true] %s66
      %s68 = sshll.u32 %s1, 4
      %s69 = int_to_ptr.hbm [resolvable:$true] %s68
      %71 = dma.vmem_to_hbm [thread:$0]  %s67, 256, %s69, [#allocation4]
    $region13: #{tpu_custom_call.1} parent=1 // pred_fallthru
      _
    // Predicated region
    $region14: #{tpu_custom_call.1} parent=1 // pred_check
      _
    $region15: #{tpu_custom_call.1} parent=1 // pred_check_branch
      %73 = sbr.rel (0) target = $region17
    $region16: #{tpu_custom_call.1} parent=1 // pred_region
      %75 = dma.done [#allocation4], 256
    $region17: #{tpu_custom_call.1} parent=1 // pred_fallthru
      _
    %76 = vsyncpa [#allocation3], 1
    %77 = vsyncpa [#allocation4], 1

</llo_original>
